<compile_context>
chip_gen: v7x
topology: tpu7x:2x2x1
jax: 0.10.0
libtpu: 0.0.40
codegen_flags: <defaults>
</compile_context>

<pallas_src>
import functools
import math

import numpy as np
import jax
import jax.numpy as jnp
from jax.experimental import pallas as pl
from jax.experimental.pallas import tpu as pltpu

LRELU_SLOPE = 0.2
LRELU_GAIN = math.sqrt(2.0)  # bias_act def_gain for 'lrelu'


def _lrelu(x):
    return jnp.where(x >= 0, x, LRELU_SLOPE * x) * LRELU_GAIN


# ------------------------------ Pallas kernels -------------------------------

def _mbstd_kernel(x_ref, o_ref, *, inv_chw):
    # x_ref: [G, n, C*H*W] (lane-dense)  ->  o_ref: [n, 1] per-group stddev stat
    x = x_ref[...]
    mu = jnp.mean(x, axis=0, keepdims=True)
    d = x - mu
    var = jnp.mean(d * d, axis=0)                       # [n, C*H*W]
    sd = jnp.sqrt(var + 1e-8)
    o_ref[...] = (jnp.sum(sd, axis=1, keepdims=True) * inv_chw).astype(o_ref.dtype)


def _conv_kernel(xp_ref, stat_ref, w_ref, tmpl_ref, b_ref, o_ref, acc_ref, *, H, W, tn):
    # Fused 3x3 conv (+ mbstd channel + bias + lrelu) for `tn` samples.
    #   xp_ref:   [tn, H+2, W+2, Cin]  zero-padded NHWC activation tile (f32)
    #   stat_ref: [tn*H*W, 1]          mbstd stat broadcast per output row (f32)
    #   w_ref:    [9, Cin, Cout]       gain-scaled conv taps, tap-major (bf16)
    #   tmpl_ref: [tn*H*W, Cout]       mbstd-channel spatial template (f32)
    #   b_ref:    [1, Cout]            bias (f32)
    #   o_ref:    [tn*H*W, Cout]       output rows ordered (n, h, w)
    #   acc_ref:  [tn*H*W, Cout]       f32 VMEM accumulator
    hw = H * W
    cin = xp_ref.shape[-1]
    for dy in range(3):
        for dx in range(3):
            t = dy * 3 + dx
            a = xp_ref[:, dy:dy + H, dx:dx + W, :]          # [tn, H, W, Cin]
            a = a.reshape(tn * hw, cin).astype(jnp.bfloat16)
            p = jnp.dot(a, w_ref[t], preferred_element_type=jnp.float32)
            if t == 0:
                acc_ref[...] = p          # no cross-grid-step carry: safe w/ "parallel"
            else:
                acc_ref[...] += p
    acc = acc_ref[...] + stat_ref[...] * tmpl_ref[...] + b_ref[...]
    o_ref[...] = _lrelu(acc).astype(o_ref.dtype)


def _head_kernel(x_ref, wfc_ref, bfc_ref, wout_ref, bout_ref, cmap_ref, o_ref,
                 acc_ref, *, inv_sqrt_cmap):
    # K-tiled fc (lrelu) -> out (linear) -> cmap projection.
    k = pl.program_id(0)

    @pl.when(k == 0)
    def _init():
        acc_ref[...] = jnp.zeros_like(acc_ref)

    acc_ref[...] += jnp.dot(x_ref[...].astype(jnp.bfloat16), wfc_ref[...],
                            preferred_element_type=jnp.float32)

    @pl.when(k == pl.num_programs(0) - 1)
    def _finalize():
        h = _lrelu(acc_ref[...] + bfc_ref[...])
        out = jnp.dot(h, wout_ref[...], preferred_element_type=jnp.float32)
        out = out + bout_ref[...]
        proj = jnp.sum(out * cmap_ref[...], axis=1, keepdims=True)
        o_ref[...] = (proj * inv_sqrt_cmap).astype(o_ref.dtype)


# ------------------------------ tile selection --------------------------------

def _pick_conv_tile(n, h, w, target_rows=256):
    # samples per conv grid step; keeps the matmul M around `target_rows`
    tn = max(1, min(n, target_rows // (h * w)))
    while n % tn:
        tn -= 1
    return tn


def _pick_head_tile(d, target=2048):
    # largest multiple-of-128 divisor of d that is <= min(target, d // 2)
    if d % 128 != 0 or d < 256:
        return d
    cap = min(target, d // 2)
    tk = 128
    for cand in range(128, cap + 1, 128):
        if d % cand == 0:
            tk = cand
    return tk


# ------------------------------ Pallas wrappers --------------------------------

def mbstd_stat_pallas(x, group_size):
    # x: [N, C, H, W] -> per-sample mbstd stat [N, 1]
    nb, c, h, w = x.shape
    g = min(group_size, nb)
    assert nb % g == 0
    n = nb // g
    chw = c * h * w
    xg = x.reshape(g, n, chw)                             # free reshape, lane-dense
    stat = pl.pallas_call(
        functools.partial(_mbstd_kernel, inv_chw=1.0 / chw),
        out_shape=jax.ShapeDtypeStruct((n, 1), jnp.float32),
        grid=(1,),
        in_specs=[pl.BlockSpec((g, n, chw), lambda i: (0, 0, 0))],
        out_specs=pl.BlockSpec((n, 1), lambda i: (0, 0)),
        compiler_params=pltpu.CompilerParams(dimension_semantics=("arbitrary",)),
    )(xg)
    return jnp.tile(stat, (g, 1))                         # sample i -> stat[i % n]


def conv3x3_mbstd_lrelu_pallas(xp, stat_rows, w_taps, tmpl_rows, b2, tn):
    n, hp, wp, cin = xp.shape
    h, w = hp - 2, wp - 2
    hw = h * w
    cout = w_taps.shape[-1]
    assert n % tn == 0
    return pl.pallas_call(
        functools.partial(_conv_kernel, H=h, W=w, tn=tn),
        out_shape=jax.ShapeDtypeStruct((n * hw, cout), jnp.float32),
        grid=(n // tn,),
        in_specs=[
            pl.BlockSpec((tn, hp, wp, cin), lambda i: (i, 0, 0, 0)),
            pl.BlockSpec((tn * hw, 1), lambda i: (i, 0)),
            pl.BlockSpec((9, cin, cout), lambda i: (0, 0, 0)),     # constant, fetched once
            pl.BlockSpec((tn * hw, cout), lambda i: (0, 0)),       # constant, fetched once
            pl.BlockSpec((1, cout), lambda i: (0, 0)),             # constant, fetched once
        ],
        out_specs=pl.BlockSpec((tn * hw, cout), lambda i: (i, 0)),
        scratch_shapes=[pltpu.VMEM((tn * hw, cout), jnp.float32)],
        compiler_params=pltpu.CompilerParams(dimension_semantics=("parallel",)),
    )(xp, stat_rows, w_taps, tmpl_rows, b2)


def head_pallas(x_flat, w_fc, b_fc, w_out, b_out, cmap, cmap_dim, tk):
    n, d = x_flat.shape
    c = w_fc.shape[1]
    k = w_out.shape[1]
    assert d % tk == 0
    return pl.pallas_call(
        functools.partial(_head_kernel, inv_sqrt_cmap=1.0 / math.sqrt(cmap_dim)),
        out_shape=jax.ShapeDtypeStruct((n, 1), jnp.float32),
        grid=(d // tk,),
        in_specs=[
            pl.BlockSpec((n, tk), lambda i: (0, i)),
            pl.BlockSpec((tk, c), lambda i: (i, 0)),               # K-tiled fc weight stream
            pl.BlockSpec((1, c), lambda i: (0, 0)),
            pl.BlockSpec((c, k), lambda i: (0, 0)),
            pl.BlockSpec((1, k), lambda i: (0, 0)),
            pl.BlockSpec((n, k), lambda i: (0, 0)),
        ],
        out_specs=pl.BlockSpec((n, 1), lambda i: (0, 0)),
        scratch_shapes=[pltpu.VMEM((n, c), jnp.float32)],
        compiler_params=pltpu.CompilerParams(dimension_semantics=("arbitrary",)),
    )(x_flat, w_fc, b_fc, w_out, b_out, cmap)


# ---------------------------------- Module -------------------------------------

class DiscriminatorEpilogue:
    def __init__(self, in_channels, cmap_dim, resolution, img_channels,
                 architecture='resnet', mbstd_group_size=4, mbstd_num_channels=1,
                 activation='lrelu', conv_clamp=None, key=None):
        # TODO(synk): architecture='skip' (fromrgb 1x1 conv) not implemented; 'orig'/'resnet' only.
        assert architecture in ('orig', 'resnet')
        assert activation == 'lrelu'
        # TODO(synk): conv_clamp not implemented (default None).
        assert conv_clamp is None
        assert cmap_dim > 0          # TODO(synk): cmap_dim == 0 head not implemented.
        assert mbstd_num_channels == 1

        self.in_channels = in_channels
        self.cmap_dim = cmap_dim
        self.resolution = resolution
        self.img_channels = img_channels
        self.mbstd_group_size = mbstd_group_size
        self.mbstd_num_channels = mbstd_num_channels

        k1, k2, k3 = jax.random.split(key, 3)
        c = in_channels
        h = w = resolution
        cin = c + mbstd_num_channels

        # ---- raw parameters (PyTorch init: weight ~ N(0,1), bias 0) ----
        self.conv_w = jax.random.normal(k1, (c, cin, 3, 3), jnp.float32)
        self.conv_b = jnp.zeros((c,), jnp.float32)
        self.conv_wgain = 1.0 / math.sqrt(cin * 9)
        fc_in = c * resolution ** 2
        self.fc_w = jax.random.normal(k2, (c, fc_in), jnp.float32)
        self.fc_b = jnp.zeros((c,), jnp.float32)
        self.fc_wgain = 1.0 / math.sqrt(fc_in)
        self.out_w = jax.random.normal(k3, (cmap_dim, c), jnp.float32)
        self.out_b = jnp.zeros((cmap_dim,), jnp.float32)
        self.out_wgain = 1.0 / math.sqrt(c)

        # ---- kernel-ready parameters (scaled / transposed / permuted ONCE) ----
        w_scaled = self.conv_w * self.conv_wgain                  # [Cout, Cin+1, 3, 3]
        # real input channels -> tap-major [9, Cin, Cout] bf16 for the MXU
        self.w_taps = jnp.transpose(w_scaled[:, :c, :, :], (2, 3, 1, 0)) \
                         .reshape(9, c, c).astype(jnp.bfloat16)
        # mbstd channel (spatially constant per sample) -> per-position template,
        # including the zero-padding border effect of the 3x3 conv.
        w_mb = w_scaled[:, c, :, :]                               # [Cout, 3, 3]
        ry = np.arange(h)[:, None] + np.arange(3)[None, :] - 1
        rx = np.arange(w)[:, None] + np.arange(3)[None, :] - 1
        vy = jnp.asarray((ry >= 0) & (ry < h), jnp.float32)       # [H, 3]
        vx = jnp.asarray((rx >= 0) & (rx < w), jnp.float32)       # [W, 3]
        self.mb_tmpl = jnp.einsum('hy,wx,oyx->hwo', vy, vx, w_mb).reshape(h * w, c)
        self.conv_b2 = self.conv_b.reshape(1, c)

        # fc weight permuted from (c,h,w)-major to (h,w,c)-major so the conv
        # output ([N, H*W, Cout] row order) feeds the head with no transpose.
        fc_w_scaled = self.fc_w * self.fc_wgain                   # [C, C*H*W]
        self.fc_w_p = jnp.transpose(fc_w_scaled.reshape(c, c, h, w), (2, 3, 1, 0)) \
                         .reshape(h * w * c, c).astype(jnp.bfloat16)
        self.fc_b2 = self.fc_b.reshape(1, c)
        self.out_w_t = (self.out_w * self.out_wgain).T            # [C, cmap_dim] f32
        self.out_b2 = self.out_b.reshape(1, cmap_dim)

    def __call__(self, x, img, cmap, force_fp32=False):
        del img, force_fp32   # img only used by architecture='skip'
        c, r = self.in_channels, self.resolution
        assert x.shape[1:] == (c, r, r)
        assert cmap.shape[1:] == (self.cmap_dim,)
        n = x.shape[0]
        x = x.astype(jnp.float32)

        # 1) minibatch-std stat (lane-dense cross-sample reduction)
        stat = mbstd_stat_pallas(x, self.mbstd_group_size)             # [N, 1]
        stat_rows = jnp.repeat(stat, r * r, axis=0)                    # [N*H*W, 1] (tiny)

        # 2) fused 3x3 conv + mbstd channel + bias + lrelu (grid over samples)
        xp = jnp.pad(jnp.transpose(x, (0, 2, 3, 1)),
                     ((0, 0), (1, 1), (1, 1), (0, 0)))                 # [N, H+2, W+2, C]
        tn = _pick_conv_tile(n, r, r)
        tmpl_rows = jnp.tile(self.mb_tmpl, (tn, 1))                    # [tn*H*W, C] (tiny)
        y = conv3x3_mbstd_lrelu_pallas(xp, stat_rows, self.w_taps, tmpl_rows,
                                       self.conv_b2, tn)               # [N*H*W, C]

        # 3) head: K-tiled fc (bf16 operands, f32 acc) + lrelu + out + cmap proj
        x_flat = y.reshape(n, r * r * c)                               # free reshape
        tk = _pick_head_tile(x_flat.shape[1])
        return head_pallas(x_flat, self.fc_w_p, self.fc_b2, self.out_w_t,
                           self.out_b2, cmap.astype(jnp.float32), self.cmap_dim, tk)


# ------------------------ pure-JAX reference (for checking) -------------------

def reference_forward(m, x, img, cmap):
    del img
    x = x.astype(jnp.float32)
    N, C, H, W = x.shape
    G = min(m.mbstd_group_size, N)
    F = m.mbstd_num_channels
    c = C // F
    y = x.reshape(G, -1, F, c, H, W)
    y = y - y.mean(axis=0)
    y = jnp.sqrt((y ** 2).mean(axis=0) + 1e-8)
    y = y.mean(axis=(2, 3, 4)).reshape(-1, F, 1, 1)
    y = jnp.tile(y, (G, 1, H, W))
    x = jnp.concatenate([x, y], axis=1)
    w = m.conv_w * m.conv_wgain
    x = jax.lax.conv_general_dilated(x, w, (1, 1), ((1, 1), (1, 1)),
                                     dimension_numbers=('NCHW', 'OIHW', 'NCHW'))
    x = x + m.conv_b[None, :, None, None]
    x = jnp.where(x >= 0, x, LRELU_SLOPE * x) * LRELU_GAIN
    x = x.reshape(N, -1)
    x = x @ (m.fc_w * m.fc_wgain).T + m.fc_b
    x = jnp.where(x >= 0, x, LRELU_SLOPE * x) * LRELU_GAIN
    x = x @ (m.out_w * m.out_wgain).T + m.out_b
    x = (x * cmap).sum(axis=1, keepdims=True) * (1.0 / math.sqrt(m.cmap_dim))
    return x


if __name__ == "__main__":
    in_channels, cmap_dim, resolution, img_channels = 8, 16, 8, 3
    batch = 8   # exercises mbstd groups (G=4, n=2), conv grid (2 steps), head K-tiling (2 steps)

    key = jax.random.PRNGKey(0)
    kp, kx, ki, kc = jax.random.split(key, 4)
    model = DiscriminatorEpilogue(in_channels, cmap_dim, resolution,
                                  img_channels, key=kp)

    x = jax.random.normal(kx, (batch, in_channels, resolution, resolution), jnp.float32)
    img = jax.random.normal(ki, (batch, img_channels, resolution, resolution), jnp.float32)
    cmap = jax.random.normal(kc, (batch, cmap_dim), jnp.float32)

    out = model(x, img, cmap)
    out = jax.block_until_ready(out)
    assert out.shape == (batch, 1) and out.dtype == jnp.float32

    ref = reference_forward(model, x, img, cmap)
    # bf16 MXU operands vs. f32 reference -> relaxed tolerance
    np.testing.assert_allclose(np.asarray(out), np.asarray(ref), rtol=5e-2, atol=5e-2)

    print("KERNEL_OK")
</pallas_src>

<mosaic_0001>
module attributes {stable_mosaic.version = 11 : i64} {
  func.func @_mbstd_kernel(%arg0: i32, %arg1: memref<4x2x512xf32, #tpu.memory_space<vmem>>, %arg2: memref<2x1xf32, #tpu.memory_space<vmem>>) attributes {dimension_semantics = [#tpu.dimension_semantics<arbitrary>], iteration_bounds = array<i64: 1>, scalar_prefetch = 0 : i64, scratch_operands = 0 : i64, tpu.core_type = #tpu.core_type<tc>, window_params = [{pipeline_mode = #tpu.pipeline_mode<synchronous>, transform_indices = @transform_0, window_bounds = array<i64: 4, 2, 512>}, {pipeline_mode = #tpu.pipeline_mode<synchronous>, transform_indices = @transform_1, window_bounds = array<i64: 2, 1>}]} {
    %c0 = arith.constant 0 : index
    %c0_0 = arith.constant 0 : index
    %c0_1 = arith.constant 0 : index
    %0 = vector.load %arg1[%c0, %c0_0, %c0_1] : memref<4x2x512xf32, #tpu.memory_space<vmem>>, vector<4x2x512xf32>
    %cst = arith.constant dense<0.000000e+00> : vector<2x512xf32>
    %1 = vector.multi_reduction <add>, %0, %cst [0] : vector<4x2x512xf32> to vector<2x512xf32>
    %2 = vector.shape_cast %1 : vector<2x512xf32> to vector<1x2x512xf32>
    %cst_2 = arith.constant 4.000000e+00 : f32
    %3 = vector.broadcast %cst_2 : f32 to vector<1x2x512xf32>
    %4 = arith.divf %2, %3 : vector<1x2x512xf32>
    %5 = vector.broadcast %4 : vector<1x2x512xf32> to vector<4x2x512xf32>
    %6 = arith.subf %0, %5 : vector<4x2x512xf32>
    %7 = arith.mulf %6, %6 : vector<4x2x512xf32>
    %cst_3 = arith.constant dense<0.000000e+00> : vector<2x512xf32>
    %8 = vector.multi_reduction <add>, %7, %cst_3 [0] : vector<4x2x512xf32> to vector<2x512xf32>
    %cst_4 = arith.constant 4.000000e+00 : f32
    %9 = vector.broadcast %cst_4 : f32 to vector<2x512xf32>
    %10 = arith.divf %8, %9 : vector<2x512xf32>
    %cst_5 = arith.constant 9.99999993E-9 : f32
    %11 = vector.broadcast %cst_5 : f32 to vector<2x512xf32>
    %12 = arith.addf %10, %11 : vector<2x512xf32>
    %13 = math.sqrt %12 : vector<2x512xf32>
    %cst_6 = arith.constant dense<0.000000e+00> : vector<2xf32>
    %14 = vector.multi_reduction <add>, %13, %cst_6 [1] : vector<2x512xf32> to vector<2xf32>
    %15 = vector.shape_cast %14 : vector<2xf32> to vector<2x1xf32>
    %cst_7 = arith.constant 0.001953125 : f32
    %16 = vector.broadcast %cst_7 : f32 to vector<2x1xf32>
    %17 = arith.mulf %15, %16 : vector<2x1xf32>
    %c0_8 = arith.constant 0 : index
    %c0_9 = arith.constant 0 : index
    %18 = vector.load %arg2[%c0_8, %c0_9] : memref<2x1xf32, #tpu.memory_space<vmem>>, vector<2x1xf32>
    tpu.vector_store %arg2[%c0_8, %c0_9], %17 {strides = array<i32>} : memref<2x1xf32, #tpu.memory_space<vmem>>, vector<2x1xf32>,
    return
  }
  func.func @transform_0(%arg0: i32) -> (i32, i32, i32) {
    %c0_i32 = arith.constant 0 : i32
    %c0_i32_0 = arith.constant 0 : i32
    %c0_i32_1 = arith.constant 0 : i32
    %c0_i32_2 = arith.constant 0 : i32
    return %c0_i32, %c0_i32_0, %c0_i32_1 : i32, i32, i32
  }
  func.func @transform_1(%arg0: i32) -> (i32, i32) {
    %c0_i32 = arith.constant 0 : i32
    %c0_i32_0 = arith.constant 0 : i32
    %c0_i32_1 = arith.constant 0 : i32
    return %c0_i32, %c0_i32_0 : i32, i32
  }
}

</mosaic_0001>

<llo_original>
// kernel: tpu_custom_call.1
$region0: #{tpu_custom_call.1}
  #allocation0 [shape = 'u32[]', space=smem, size = 0x4, offset = 0x4, fixed_abs, tag = 'smem constant byte address 0x4 - core index']
  #allocation1 [shape = 'u32[144,128]{1,0:T(1,128)}', space=vmem, size = 0x12000, scoped, tag = 'internal scratch']
  %s0 = inlined_call_operand.hbm [shape: f32[4,2,512], index: 0, kind: input, shape index: {}]
  %s1 = inlined_call_operand.vmem [shape: f32[2,1], index: 1, kind: output, shape index: {}]
  %s2 = sld [smem:[#allocation0]]
  $region18: #{tpu_custom_call.1} parent=0
    _
  %s4 = ssub.s32 1, %s2
  %s5 = scalar_select 0, %s4, %s2
  $region1: #{tpu_custom_call.1} parent=0
    #allocation2 [shape = 'u8[16384]{0}', space=vmem, size = 0x4000, scoped, tag = 'input window, operand 0, single buffered']
    #allocation3 [shape = 's32[1]{0}', space=sflag, size = 0x4, scoped, tag = 'scoped memory for tpu_custom_call.1']
    %6 = vsyncpa [#allocation3], 0
    // Predicated region
    $region2: #{tpu_custom_call.1} parent=1 // pred_check
      _
    $region3: #{tpu_custom_call.1} parent=1 // pred_check_branch
      %8 = sbr.rel (0) target = $region5
    $region4: #{tpu_custom_call.1} parent=1 // pred_region
      %s10 = ssub.s32 512, 512
      %11 = vsyncadd [#allocation3], %s10
      %s12 = sshll.u32 [#allocation2], 4
      %s13 = int_to_ptr.vmem [resolvable:$true] %s12
      %18 = dma.hbm_to_vmem [thread:$0]  %s0, 512, %s13, [#allocation3], 128, 128, 8
    $region5: #{tpu_custom_call.1} parent=1 // pred_fallthru
      _
    // Predicated region
    $region6: #{tpu_custom_call.1} parent=1 // pred_check
      _
    $region7: #{tpu_custom_call.1} parent=1 // pred_check_branch
      %20 = sbr.rel (0) target = $region9
    $region8: #{tpu_custom_call.1} parent=1 // pred_region
      %21 = dma.done [#allocation3], 512
    $region9: #{tpu_custom_call.1} parent=1 // pred_fallthru
      _
    %v22 = vld [vmem:[#allocation2] sm:$0xff]
    %v23 = vld [vmem:[#allocation2 + $0x8] sm:$0xff]
    %v24 = vld [vmem:[#allocation2 + $0x10] sm:$0xff]
    %v25 = vld [vmem:[#allocation2 + $0x18] sm:$0xff]
    %v30 = vcombine.high %v22, %v22
    %v32 = vunpack.c.l.s4 1983009808
    %v33 = vunpack.c.0.s8 %v32
    %v34 = vlaneseq
    %v35 = vshrl.u32 %v34, 7
    %v36 = vsub.s32 %v33, %v35
    %v37 = vrot.slane %v22, %v36
    %v39 = vunpack.c.l.s4 1983009808
    %v40 = vunpack.c.0.s8 %v39
    %v41 = vlaneseq
    %v42 = vshrl.u32 %v41, 7
    %v43 = vsub.s32 %v40, %v42
    %v44 = vrot.slane %v30, %v43
    %v45 = vcombine.high %v37, %v37
    %v46 = vcombine.high %v44, %v44
    %v47 = vcombine.high %v23, %v23
    %v49 = vunpack.c.l.s4 1983009808
    %v50 = vunpack.c.0.s8 %v49
    %v51 = vlaneseq
    %v52 = vshrl.u32 %v51, 7
    %v53 = vsub.s32 %v50, %v52
    %v54 = vrot.slane %v23, %v53
    %v56 = vunpack.c.l.s4 1983009808
    %v57 = vunpack.c.0.s8 %v56
    %v58 = vlaneseq
    %v59 = vshrl.u32 %v58, 7
    %v60 = vsub.s32 %v57, %v59
    %v61 = vrot.slane %v47, %v60
    %v62 = vcombine.high %v54, %v54
    %v63 = vcombine.high %v61, %v61
    %v64 = vcombine.high %v24, %v24
    %v66 = vunpack.c.l.s4 1983009808
    %v67 = vunpack.c.0.s8 %v66
    %v68 = vlaneseq
    %v69 = vshrl.u32 %v68, 7
    %v70 = vsub.s32 %v67, %v69
    %v71 = vrot.slane %v24, %v70
    %v73 = vunpack.c.l.s4 1983009808
    %v74 = vunpack.c.0.s8 %v73
    %v75 = vlaneseq
    %v76 = vshrl.u32 %v75, 7
    %v77 = vsub.s32 %v74, %v76
    %v78 = vrot.slane %v64, %v77
    %v79 = vcombine.high %v71, %v71
    %v80 = vcombine.high %v78, %v78
    %v81 = vcombine.high %v25, %v25
    %v83 = vunpack.c.l.s4 1983009808
    %v84 = vunpack.c.0.s8 %v83
    %v85 = vlaneseq
    %v86 = vshrl.u32 %v85, 7
    %v87 = vsub.s32 %v84, %v86
    %v88 = vrot.slane %v25, %v87
    %v90 = vunpack.c.l.s4 1983009808
    %v91 = vunpack.c.0.s8 %v90
    %v92 = vlaneseq
    %v93 = vshrl.u32 %v92, 7
    %v94 = vsub.s32 %v91, %v93
    %v95 = vrot.slane %v81, %v94
    %v96 = vcombine.high %v88, %v88
    %v97 = vcombine.high %v95, %v95
    %vm114 = vcmask 1041408
    %v115 = vsel %vm114, %v37, 0.0
    %v116 = vsel %vm114, %v54, 0.0
    %v117 = vadd.f32 %v115, %v116
    %v118 = vsel %vm114, %v71, 0.0
    %v119 = vadd.f32 %v117, %v118
    %v120 = vsel %vm114, %v88, 0.0
    %v121 = vadd.f32 %v119, %v120
    %v122 = vsel %vm114, %v45, 0.0
    %v123 = vsel %vm114, %v62, 0.0
    %v124 = vadd.f32 %v122, %v123
    %v125 = vsel %vm114, %v79, 0.0
    %v126 = vadd.f32 %v124, %v125
    %v127 = vsel %vm114, %v96, 0.0
    %v128 = vadd.f32 %v126, %v127
    %v129 = vsel %vm114, %v44, 0.0
    %v130 = vsel %vm114, %v61, 0.0
    %v131 = vadd.f32 %v129, %v130
    %v132 = vsel %vm114, %v78, 0.0
    %v133 = vadd.f32 %v131, %v132
    %v134 = vsel %vm114, %v95, 0.0
    %v135 = vadd.f32 %v133, %v134
    %v136 = vsel %vm114, %v46, 0.0
    %v137 = vsel %vm114, %v63, 0.0
    %v138 = vadd.f32 %v136, %v137
    %v139 = vsel %vm114, %v80, 0.0
    %v140 = vadd.f32 %v138, %v139
    %v141 = vsel %vm114, %v97, 0.0
    %v142 = vadd.f32 %v140, %v141
    %v143 = vrcp.pop 4.0
    %v144 = vmul.f32 %v121, %v143
    %v145 = vmul.f32 %v128, %v143
    %v146 = vmul.f32 %v135, %v143
    %v147 = vmul.f32 %v142, %v143
    %v152 = vcombine.low %v144, %v145
    %v153 = vcombine.low %v146, %v147
    %v155 = vunpack.c.l.s4 1983009808
    %v156 = vunpack.c.0.s8 %v155
    %v157 = vlaneseq
    %v158 = vshrl.u32 %v157, 7
    %v159 = vsub.s32 %v156, %v158
    %v160 = vrot.slane %v152, %v159
    %v162 = vunpack.c.l.s4 1983009808
    %v163 = vunpack.c.0.s8 %v162
    %v164 = vlaneseq
    %v165 = vshrl.u32 %v164, 7
    %v166 = vsub.s32 %v163, %v165
    %v167 = vrot.slane %v153, %v166
    %v168 = vcombine.low %v160, %v167
    %v170 = vsub.f32 %v22, %v168
    %v171 = vsub.f32 %v23, %v168
    %v172 = vsub.f32 %v24, %v168
    %v173 = vsub.f32 %v25, %v168
    %v174 = vmul.f32 %v170, %v170
    %v175 = vmul.f32 %v171, %v171
    %v176 = vmul.f32 %v172, %v172
    %v177 = vmul.f32 %v173, %v173
    %v182 = vcombine.high %v174, %v174
    %v184 = vunpack.c.l.s4 1983009808
    %v185 = vunpack.c.0.s8 %v184
    %v186 = vlaneseq
    %v187 = vshrl.u32 %v186, 7
    %v188 = vsub.s32 %v185, %v187
    %v189 = vrot.slane %v174, %v188
    %v191 = vunpack.c.l.s4 1983009808
    %v192 = vunpack.c.0.s8 %v191
    %v193 = vlaneseq
    %v194 = vshrl.u32 %v193, 7
    %v195 = vsub.s32 %v192, %v194
    %v196 = vrot.slane %v182, %v195
    %v197 = vcombine.high %v189, %v189
    %v198 = vcombine.high %v196, %v196
    %v199 = vcombine.high %v175, %v175
    %v201 = vunpack.c.l.s4 1983009808
    %v202 = vunpack.c.0.s8 %v201
    %v203 = vlaneseq
    %v204 = vshrl.u32 %v203, 7
    %v205 = vsub.s32 %v202, %v204
    %v206 = vrot.slane %v175, %v205
    %v208 = vunpack.c.l.s4 1983009808
    %v209 = vunpack.c.0.s8 %v208
    %v210 = vlaneseq
    %v211 = vshrl.u32 %v210, 7
    %v212 = vsub.s32 %v209, %v211
    %v213 = vrot.slane %v199, %v212
    %v214 = vcombine.high %v206, %v206
    %v215 = vcombine.high %v213, %v213
    %v216 = vcombine.high %v176, %v176
    %v218 = vunpack.c.l.s4 1983009808
    %v219 = vunpack.c.0.s8 %v218
    %v220 = vlaneseq
    %v221 = vshrl.u32 %v220, 7
    %v222 = vsub.s32 %v219, %v221
    %v223 = vrot.slane %v176, %v222
    %v225 = vunpack.c.l.s4 1983009808
    %v226 = vunpack.c.0.s8 %v225
    %v227 = vlaneseq
    %v228 = vshrl.u32 %v227, 7
    %v229 = vsub.s32 %v226, %v228
    %v230 = vrot.slane %v216, %v229
    %v231 = vcombine.high %v223, %v223
    %v232 = vcombine.high %v230, %v230
    %v233 = vcombine.high %v177, %v177
    %v235 = vunpack.c.l.s4 1983009808
    %v236 = vunpack.c.0.s8 %v235
    %v237 = vlaneseq
    %v238 = vshrl.u32 %v237, 7
    %v239 = vsub.s32 %v236, %v238
    %v240 = vrot.slane %v177, %v239
    %v242 = vunpack.c.l.s4 1983009808
    %v243 = vunpack.c.0.s8 %v242
    %v244 = vlaneseq
    %v245 = vshrl.u32 %v244, 7
    %v246 = vsub.s32 %v243, %v245
    %v247 = vrot.slane %v233, %v246
    %v248 = vcombine.high %v240, %v240
    %v249 = vcombine.high %v247, %v247
    %v266 = vsel %vm114, %v189, 0.0
    %v267 = vsel %vm114, %v206, 0.0
    %v268 = vadd.f32 %v266, %v267
    %v269 = vsel %vm114, %v223, 0.0
    %v270 = vadd.f32 %v268, %v269
    %v271 = vsel %vm114, %v240, 0.0
    %v272 = vadd.f32 %v270, %v271
    %v273 = vsel %vm114, %v197, 0.0
    %v274 = vsel %vm114, %v214, 0.0
    %v275 = vadd.f32 %v273, %v274
    %v276 = vsel %vm114, %v231, 0.0
    %v277 = vadd.f32 %v275, %v276
    %v278 = vsel %vm114, %v248, 0.0
    %v279 = vadd.f32 %v277, %v278
    %v280 = vsel %vm114, %v196, 0.0
    %v281 = vsel %vm114, %v213, 0.0
    %v282 = vadd.f32 %v280, %v281
    %v283 = vsel %vm114, %v230, 0.0
    %v284 = vadd.f32 %v282, %v283
    %v285 = vsel %vm114, %v247, 0.0
    %v286 = vadd.f32 %v284, %v285
    %v287 = vsel %vm114, %v198, 0.0
    %v288 = vsel %vm114, %v215, 0.0
    %v289 = vadd.f32 %v287, %v288
    %v290 = vsel %vm114, %v232, 0.0
    %v291 = vadd.f32 %v289, %v290
    %v292 = vsel %vm114, %v249, 0.0
    %v293 = vadd.f32 %v291, %v292
    %v294 = vmul.f32 %v272, %v143
    %v295 = vmul.f32 %v279, %v143
    %v296 = vmul.f32 %v286, %v143
    %v297 = vmul.f32 %v293, %v143
    %v298 = vadd.f32 %v294, 1e-08
    %v299 = vadd.f32 %v295, 1e-08
    %v300 = vadd.f32 %v296, 1e-08
    %v301 = vadd.f32 %v297, 1e-08
    %v302 = vrsqrt.pop %v298
    %v303 = vmul.f32 %v298, %v302
    %vm304 = vcmp.eq.f32.partialorder %v298, inf
    %v305 = vsel %vm304, %v298, %v303
    %vm306 = vcmp.eq.f32.partialorder %v298, 0.0
    %v307 = vand.u32 %v298, 2147483648
    %v308 = vsel %vm306, %v307, %v305
    %v309 = vrsqrt.pop %v299
    %v310 = vmul.f32 %v299, %v309
    %vm311 = vcmp.eq.f32.partialorder %v299, inf
    %v312 = vsel %vm311, %v299, %v310
    %vm313 = vcmp.eq.f32.partialorder %v299, 0.0
    %v314 = vand.u32 %v299, 2147483648
    %v315 = vsel %vm313, %v314, %v312
    %v316 = vrsqrt.pop %v300
    %v317 = vmul.f32 %v300, %v316
    %vm318 = vcmp.eq.f32.partialorder %v300, inf
    %v319 = vsel %vm318, %v300, %v317
    %vm320 = vcmp.eq.f32.partialorder %v300, 0.0
    %v321 = vand.u32 %v300, 2147483648
    %v322 = vsel %vm320, %v321, %v319
    %v323 = vrsqrt.pop %v301
    %v324 = vmul.f32 %v301, %v323
    %vm325 = vcmp.eq.f32.partialorder %v301, inf
    %v326 = vsel %vm325, %v301, %v324
    %vm327 = vcmp.eq.f32.partialorder %v301, 0.0
    %v328 = vand.u32 %v301, 2147483648
    %v329 = vsel %vm327, %v328, %v326
    %v330 = vsel %vm114, %v308, 0.0
    %v331 = vsel %vm114, %v315, 0.0
    %v332 = vadd.f32 %v330, %v331
    %v333 = vsel %vm114, %v322, 0.0
    %v334 = vadd.f32 %v332, %v333
    %v335 = vsel %vm114, %v329, 0.0
    %v336 = vadd.f32 %v334, %v335
    %337 = vadd.xlane.f32.xlu0 %v336
    %v338 = vpop.xlane.xlu0 %337
    %v339 = vmul.f32 %v338, 0.001953125
    %vm340 = vcmask 1024
    %341 = vst.msk [vmem:[%s1] sm:$0x3] %vm340, %v339
    // Predicated region
    $region10: #{tpu_custom_call.1} parent=1 // pred_check
      _
    $region11: #{tpu_custom_call.1} parent=1 // pred_check_branch
      %343 = sbr.rel (0) target = $region13
    $region12: #{tpu_custom_call.1} parent=1 // pred_region
      _
    $region13: #{tpu_custom_call.1} parent=1 // pred_fallthru
      _
    // Predicated region
    $region14: #{tpu_custom_call.1} parent=1 // pred_check
      _
    $region15: #{tpu_custom_call.1} parent=1 // pred_check_branch
      %345 = sbr.rel (0) target = $region17
    $region16: #{tpu_custom_call.1} parent=1 // pred_region
      _
    $region17: #{tpu_custom_call.1} parent=1 // pred_fallthru
      _
    %346 = vsyncpa [#allocation3], 1

</llo_original>
